<compile_context>
chip_gen: v7x
topology: tpu7x:2x2x1
jax: 0.10.0
libtpu: 0.0.40
codegen_flags: <defaults>
</compile_context>

<pallas_src>
import jax
import jax.numpy as jnp
from jax.experimental import pallas as pl
from jax.experimental.pallas import tpu as pltpu


def _maxpool2x2_kernel(x_ref, o_ref):
    """2x2/stride-2 max pool on a pair-of-rows layout.

    x_ref: (TILE_R, 2*W)  -- row k = [image row 2i | image row 2i+1] of one (n, c)
    o_ref: (TILE_R, W//2) -- pooled output row i of the same (n, c)
    """
    half = o_ref.shape[1]        # W // 2
    width = 2 * half             # W

    x = x_ref[...]                                        # (TILE_R, 2W)

    # H-direction pair max: two static lane slices (offsets 0 and W).
    z = jnp.maximum(x[:, :width], x[:, width:])           # (TILE_R, W)
    z32 = z.astype(jnp.float32)

    # W-direction pair max needs a lane-compress by 2.  Do it with exact 0/1
    # selection matmuls on the MXU: sel_even[w, v] = (w == 2v),
    # sel_odd[w, v] = (w == 2v + 1).  Selection by a 0/1 matrix is linear and,
    # with bf16 operands, bit-exact (one nonzero term, f32 accumulation).
    rows = jax.lax.broadcasted_iota(jnp.int32, (width, half), 0)
    cols = jax.lax.broadcasted_iota(jnp.int32, (width, half), 1)
    sel_even = (rows == 2 * cols).astype(jnp.bfloat16)
    sel_odd = (rows == 2 * cols + 1).astype(jnp.bfloat16)

    if x_ref.dtype == jnp.bfloat16:
        parts = (z32.astype(jnp.bfloat16),)                # already exact in bf16
    else:
        # 3-way bf16 split of the f32 values (each split/subtract is exact on
        # the VPU), so every bf16 matmul below is exact and the f32 sum of the
        # three selected parts reconstructs the f32 value.
        b1 = z32.astype(jnp.bfloat16)
        r1 = z32 - b1.astype(jnp.float32)
        b2 = r1.astype(jnp.bfloat16)
        r2 = r1 - b2.astype(jnp.float32)
        b3 = r2.astype(jnp.bfloat16)
        parts = (b1, b2, b3)

    even = jnp.zeros((x.shape[0], half), jnp.float32)
    odd = jnp.zeros((x.shape[0], half), jnp.float32)
    for p in parts:
        even = even + jnp.dot(p, sel_even, preferred_element_type=jnp.float32)
        odd = odd + jnp.dot(p, sel_odd, preferred_element_type=jnp.float32)

    o_ref[...] = jnp.maximum(even, odd).astype(o_ref.dtype)


def _pick_tile_rows(nrows, row_bytes, target_bytes=2 * 1024 * 1024):
    """Largest multiple-of-8 divisor of nrows with ~target_bytes input blocks;
    then split (if cheap) so the parallel grid has >= 4 steps (megacore)."""
    if nrows % 8 != 0:
        return nrows                      # full-dim block is always legal
    max_rows = min(nrows, max(8, target_bytes // max(row_bytes, 1)))
    max_rows -= max_rows % 8
    tile = 8
    t = max(8, max_rows)
    while t >= 8:
        if nrows % t == 0:
            tile = t
            break
        t -= 8
    while (nrows // tile) < 4 and tile % 16 == 0:
        tile //= 2
    return tile


def maxpool2x2_nchw(x):
    """MaxPool2d(kernel_size=2, stride=2) on an NCHW tensor via Pallas."""
    n, c, h, w = x.shape
    assert h % 2 == 0 and w % 2 == 0, "H and W must be even for 2x2/2 pooling"
    nrows = n * c * (h // 2)

    # Free (contiguous) reshape: row k = two consecutive image rows of one (n,c).
    x2 = x.reshape(nrows, 2 * w)
    tile_r = _pick_tile_rows(nrows, 2 * w * x.dtype.itemsize)

    out2 = pl.pallas_call(
        _maxpool2x2_kernel,
        out_shape=jax.ShapeDtypeStruct((nrows, w // 2), x.dtype),
        grid=(nrows // tile_r,),
        in_specs=[pl.BlockSpec((tile_r, 2 * w), lambda i: (i, 0))],
        out_specs=pl.BlockSpec((tile_r, w // 2), lambda i: (i, 0)),
        compiler_params=pltpu.CompilerParams(
            dimension_semantics=("parallel",),
            vmem_limit_bytes=32 * 1024 * 1024,
        ),
    )(x2)

    # Free reshape back to NCHW.
    return out2.reshape(n, c, h // 2, w // 2)


def spike_pool_forward(x, spiking=True, step=2):
    """JAX/Pallas equivalent of SpikePool.forward.

    spiking=True : x is (T, B, C, H, W); pool applied per timestep.
    spiking=False: x is (B, C, H, W); pool applied directly (self.pool(x)).
    """
    if not spiking:
        return maxpool2x2_nchw(x)
    t, b, c, h, w = x.shape
    out = maxpool2x2_nchw(x.reshape(t * b, c, h, w))
    return out.reshape(t, b, c, h // 2, w // 2)


if __name__ == "__main__":
    key = jax.random.PRNGKey(0)
    T, B, C, H, W = 2, 2, 4, 16, 16          # step=2, small shapes
    x = jax.random.normal(key, (T, B, C, H, W), dtype=jnp.float32)

    out = jax.block_until_ready(spike_pool_forward(x, spiking=True, step=T))

    # pure-JAX reference for MaxPool2d(2, 2) over (T, B, C, H, W)
    ref = x.reshape(T, B, C, H // 2, 2, W // 2, 2).max(axis=(4, 6))
    assert out.shape == (T, B, C, H // 2, W // 2), out.shape
    assert out.dtype == x.dtype
    assert jnp.allclose(out, ref), "Pallas maxpool mismatch vs reference (spiking)"

    # non-spiking (plain 4-D) path: SpikePool just calls self.pool(x)
    x4 = jax.random.normal(jax.random.PRNGKey(1), (B, C, H, W), dtype=jnp.float32)
    out4 = jax.block_until_ready(spike_pool_forward(x4, spiking=False))
    ref4 = x4.reshape(B, C, H // 2, 2, W // 2, 2).max(axis=(3, 5))
    assert jnp.allclose(out4, ref4), "Pallas maxpool mismatch vs reference (non-spiking)"

    print("KERNEL_OK")
</pallas_src>

<mosaic_0001>
module attributes {stable_mosaic.version = 11 : i64} {
  func.func @_maxpool2x2_kernel(%arg0: i32, %arg1: memref<32x32xf32, #tpu.memory_space<vmem>>, %arg2: memref<32x8xf32, #tpu.memory_space<vmem>>) attributes {dimension_semantics = [#tpu.dimension_semantics<parallel>], iteration_bounds = array<i64: 4>, scalar_prefetch = 0 : i64, scratch_operands = 0 : i64, tpu.core_type = #tpu.core_type<tc>, window_params = [{transform_indices = @transform_0, window_bounds = array<i64: 32, 32>}, {transform_indices = @transform_1, window_bounds = array<i64: 32, 8>}]} {
    %c0 = arith.constant 0 : index
    %c0_0 = arith.constant 0 : index
    %0 = vector.load %arg1[%c0, %c0_0] : memref<32x32xf32, #tpu.memory_space<vmem>>, vector<32x32xf32>
    %1 = vector.extract_strided_slice %0 {offsets = [0, 0], sizes = [32, 16], strides = [1, 1]} : vector<32x32xf32> to vector<32x16xf32>
    %2 = vector.extract_strided_slice %0 {offsets = [0, 16], sizes = [32, 16], strides = [1, 1]} : vector<32x32xf32> to vector<32x16xf32>
    %3 = arith.maximumf %1, %2 : vector<32x16xf32>
    %4 = tpu.iota {dimensions = array<i32: 0>} : vector<16x8xi32>
    %5 = tpu.iota {dimensions = array<i32: 1>} : vector<16x8xi32>
    %c2_i32 = arith.constant 2 : i32
    %6 = vector.broadcast %c2_i32 : i32 to vector<16x8xi32>
    %7 = arith.muli %6, %5 : vector<16x8xi32>
    %8 = arith.cmpi eq, %4, %7 : vector<16x8xi32>
    %9 = arith.extui %8 : vector<16x8xi1> to vector<16x8xi32>
    %10 = arith.sitofp %9 : vector<16x8xi32> to vector<16x8xf32>
    %11 = arith.truncf %10 : vector<16x8xf32> to vector<16x8xbf16>
    %c2_i32_1 = arith.constant 2 : i32
    %12 = vector.broadcast %c2_i32_1 : i32 to vector<16x8xi32>
    %13 = arith.muli %12, %5 : vector<16x8xi32>
    %c1_i32 = arith.constant 1 : i32
    %14 = vector.broadcast %c1_i32 : i32 to vector<16x8xi32>
    %15 = arith.addi %13, %14 : vector<16x8xi32>
    %16 = arith.cmpi eq, %4, %15 : vector<16x8xi32>
    %17 = arith.extui %16 : vector<16x8xi1> to vector<16x8xi32>
    %18 = arith.sitofp %17 : vector<16x8xi32> to vector<16x8xf32>
    %19 = arith.truncf %18 : vector<16x8xf32> to vector<16x8xbf16>
    %20 = arith.truncf %3 : vector<32x16xf32> to vector<32x16xbf16>
    %21 = arith.extf %20 : vector<32x16xbf16> to vector<32x16xf32>
    %22 = arith.subf %3, %21 : vector<32x16xf32>
    %23 = arith.truncf %22 : vector<32x16xf32> to vector<32x16xbf16>
    %24 = arith.extf %23 : vector<32x16xbf16> to vector<32x16xf32>
    %25 = arith.subf %22, %24 : vector<32x16xf32>
    %26 = arith.truncf %25 : vector<32x16xf32> to vector<32x16xbf16>
    %cst = arith.constant 0.000000e+00 : f32
    %27 = vector.broadcast %cst : f32 to vector<32x8xf32>
    %cst_2 = arith.constant 0.000000e+00 : f32
    %28 = vector.broadcast %cst_2 : f32 to vector<32x8xf32>
    %cst_3 = arith.constant dense<0.000000e+00> : vector<32x8xf32>
    %29 = tpu.matmul %20, %11, %cst_3 {dimension_numbers = #tpu.dot_dimension_numbers<[1], [0], [0], [1], [0, 0, 1, 1], [], []>} : vector<32x16xbf16>, vector<16x8xbf16>, vector<32x8xf32> -> vector<32x8xf32>
    %30 = arith.addf %27, %29 : vector<32x8xf32>
    %cst_4 = arith.constant dense<0.000000e+00> : vector<32x8xf32>
    %31 = tpu.matmul %20, %19, %cst_4 {dimension_numbers = #tpu.dot_dimension_numbers<[1], [0], [0], [1], [0, 0, 1, 1], [], []>} : vector<32x16xbf16>, vector<16x8xbf16>, vector<32x8xf32> -> vector<32x8xf32>
    %32 = arith.addf %28, %31 : vector<32x8xf32>
    %cst_5 = arith.constant dense<0.000000e+00> : vector<32x8xf32>
    %33 = tpu.matmul %23, %11, %cst_5 {dimension_numbers = #tpu.dot_dimension_numbers<[1], [0], [0], [1], [0, 0, 1, 1], [], []>} : vector<32x16xbf16>, vector<16x8xbf16>, vector<32x8xf32> -> vector<32x8xf32>
    %34 = arith.addf %30, %33 : vector<32x8xf32>
    %cst_6 = arith.constant dense<0.000000e+00> : vector<32x8xf32>
    %35 = tpu.matmul %23, %19, %cst_6 {dimension_numbers = #tpu.dot_dimension_numbers<[1], [0], [0], [1], [0, 0, 1, 1], [], []>} : vector<32x16xbf16>, vector<16x8xbf16>, vector<32x8xf32> -> vector<32x8xf32>
    %36 = arith.addf %32, %35 : vector<32x8xf32>
    %cst_7 = arith.constant dense<0.000000e+00> : vector<32x8xf32>
    %37 = tpu.matmul %26, %11, %cst_7 {dimension_numbers = #tpu.dot_dimension_numbers<[1], [0], [0], [1], [0, 0, 1, 1], [], []>} : vector<32x16xbf16>, vector<16x8xbf16>, vector<32x8xf32> -> vector<32x8xf32>
    %38 = arith.addf %34, %37 : vector<32x8xf32>
    %cst_8 = arith.constant dense<0.000000e+00> : vector<32x8xf32>
    %39 = tpu.matmul %26, %19, %cst_8 {dimension_numbers = #tpu.dot_dimension_numbers<[1], [0], [0], [1], [0, 0, 1, 1], [], []>} : vector<32x16xbf16>, vector<16x8xbf16>, vector<32x8xf32> -> vector<32x8xf32>
    %40 = arith.addf %36, %39 : vector<32x8xf32>
    %41 = arith.maximumf %38, %40 : vector<32x8xf32>
    %c0_9 = arith.constant 0 : index
    %c0_10 = arith.constant 0 : index
    %42 = vector.load %arg2[%c0_9, %c0_10] : memref<32x8xf32, #tpu.memory_space<vmem>>, vector<32x8xf32>
    tpu.vector_store %arg2[%c0_9, %c0_10], %41 {strides = array<i32>} : memref<32x8xf32, #tpu.memory_space<vmem>>, vector<32x8xf32>,
    return
  }
  func.func @transform_0(%arg0: i32) -> (i32, i32) {
    %c0_i32 = arith.constant 0 : i32
    %c0_i32_0 = arith.constant 0 : i32
    return %arg0, %c0_i32 : i32, i32
  }
  func.func @transform_1(%arg0: i32) -> (i32, i32) {
    %c0_i32 = arith.constant 0 : i32
    %c0_i32_0 = arith.constant 0 : i32
    return %arg0, %c0_i32 : i32, i32
  }
}

</mosaic_0001>

<llo_original>
// kernel: tpu_custom_call.1
$region0: #{tpu_custom_call.1}
  #allocation0 [shape = 'u32[]', space=smem, size = 0x4, offset = 0x4, fixed_abs, tag = 'smem constant byte address 0x4 - core index']
  #allocation1 [shape = 'u32[144,128]{1,0:T(1,128)}', space=vmem, size = 0x12000, scoped, tag = 'internal scratch']
  %s0 = inlined_call_operand.vmem [shape: f32[128,32], index: 0, kind: input, shape index: {}]
  %s1 = inlined_call_operand.vmem [shape: f32[128,8], index: 1, kind: output, shape index: {}]
  %s2 = sld [smem:[#allocation0]]
  $region37: #{tpu_custom_call.1} parent=0
    _
  %s4 = ssub.s32 1, %s2
  %s5 = scalar_select 0, %s4, %s2
  loop: start=0, step=1, limit=6
  $region2: #{tpu_custom_call.1} parent=0 // loop_pre_header
    _
  $region3: #{tpu_custom_call.1} parent=0 // loop_header
    %s7 = sphi 0, %s11
    %p8 = scmp.ge.s32.totalorder %s7, 6
    %s17 = sphi 0, %s19
    %s20 = sphi 0, %s17
    %s21 = sphi 0, %s20
    %s37 = sphi 0, %s21
    %s43 = sphi 0, %s45
    %s46 = sphi 0, %s43
    %s47 = sphi 0, %s46
    %s63 = sphi 0, %s47
  $region4: #{tpu_custom_call.1} parent=0 // loop_header_branch
    %10 = sbr.rel (%p8) target = $region8
  $region5: #{tpu_custom_call.1} parent=0 // loop_body
    %s12 = ssub.s32 %s7, 1
    %s13 = ssub.s32 %s7, 2
    %s14 = sadd.s32 %s7, 1
    %s15 = ssub.s32 %s7, %s14
    %p16 = scmp.eq.s32.totalorder %s15, 0
    %s18 = sadd.s32 %s17, 1
    %s19 = scalar_select %p16, %s17, %s18
    %p22 = pneg %p16
    %p23 = scmp.eq.s32.totalorder %s7, 3
    %p24 = por %p22, %p23
    %p25 = scmp.ne.s32.totalorder %s17, %s20
    %p26 = scmp.eq.s32.totalorder %s7, 0
    %p27 = por %p25, %p26
    %p28 = scmp.ne.s32.totalorder %s17, %s20
    %p29 = scmp.eq.s32.totalorder %s12, 3
    %p30 = por %p28, %p29
    %p31 = scmp.ne.s32.totalorder %s20, %s21
    %p32 = scmp.eq.s32.totalorder %s12, 0
    %p33 = por %p31, %p32
    %p34 = scmp.ne.s32.totalorder %s20, %s21
    %p35 = scmp.eq.s32.totalorder %s13, 3
    %p36 = por %p34, %p35
    %p38 = scmp.ne.s32.totalorder %s21, %s37
    %p39 = scmp.eq.s32.totalorder %s13, 0
    %p40 = por %p38, %p39
    %s41 = ssub.s32 %s7, %s14
    %p42 = scmp.eq.s32.totalorder %s41, 0
    %s44 = sadd.s32 %s43, 1
    %s45 = scalar_select %p42, %s43, %s44
    %p48 = pneg %p42
    %p49 = scmp.eq.s32.totalorder %s7, 3
    %p50 = por %p48, %p49
    %p51 = scmp.ne.s32.totalorder %s43, %s46
    %p52 = scmp.eq.s32.totalorder %s7, 0
    %p53 = por %p51, %p52
    %p54 = scmp.ne.s32.totalorder %s43, %s46
    %p55 = scmp.eq.s32.totalorder %s12, 3
    %p56 = por %p54, %p55
    %p57 = scmp.ne.s32.totalorder %s46, %s47
    %p58 = scmp.eq.s32.totalorder %s12, 0
    %p59 = por %p57, %p58
    %p60 = scmp.ne.s32.totalorder %s46, %s47
    %p61 = scmp.eq.s32.totalorder %s13, 3
    %p62 = por %p60, %p61
    %p64 = scmp.ne.s32.totalorder %s47, %s63
    %p65 = scmp.eq.s32.totalorder %s13, 0
    %p66 = por %p64, %p65
    %p67 = scmp.le.s32.totalorder 1, %s7
    %p68 = scmp.lt.s32.totalorder %s7, 5
    %p69 = pnand %p67, %p68
    %p70 = pneg %p69
    // Predicated region
    $region9: #{tpu_custom_call.1} parent=5 // pred_check
      _
    $region10: #{tpu_custom_call.1} parent=5 // pred_check_branch
      %72 = sbr.rel (%p69) target = $region12
    $region11: #{tpu_custom_call.1} parent=5 // pred_region
      %s73 = ssub.s32 %s7, 1
    $region12: #{tpu_custom_call.1} parent=5 // pred_fallthru
      _
    %p74 = scmp.lt.s32.totalorder %s7, 4
    // Predicated region
    $region13: #{tpu_custom_call.1} parent=5 // pred_check
      %p75 = pneg %p74
    $region14: #{tpu_custom_call.1} parent=5 // pred_check_branch
      %77 = sbr.rel (%p75) target = $region16
    $region15: #{tpu_custom_call.1} parent=5 // pred_region
      // Predicated region
      $region17: #{tpu_custom_call.1} parent=15 // pred_check
        %p78 = pneg %p27
      $region18: #{tpu_custom_call.1} parent=15 // pred_check_branch
        %80 = sbr.rel (%p78) target = $region20
      $region19: #{tpu_custom_call.1} parent=15 // pred_region
        %s81 = smul.u32 4, %s7
        %p82 = scmp.lt.s32.totalorder %s81, 15
        %s83 = scalar_select %p82, %s81, 15
        %s84 = smul.addr %s83, 8
        %s85 = scalar_lea.vmem %s0, %s84
        %s86 = smul.u32 4, %s7
      $region20: #{tpu_custom_call.1} parent=15 // pred_fallthru
        _
    $region16: #{tpu_custom_call.1} parent=5 // pred_fallthru
      _
    %p87 = scmp.le.s32.totalorder 1, %s7
    %p88 = scmp.lt.s32.totalorder %s7, 5
    %p89 = pnand %p87, %p88
    %p90 = pneg %p89
    // Predicated region
    $region21: #{tpu_custom_call.1} parent=5 // pred_check
      _
    $region22: #{tpu_custom_call.1} parent=5 // pred_check_branch
      %92 = sbr.rel (%p89) target = $region24
    $region23: #{tpu_custom_call.1} parent=5 // pred_region
      %s93 = ssub.s32 %s7, 1
      %s94 = smul.u32 4, %s12
      %p95 = scmp.lt.s32.totalorder %s94, 15
      %s96 = scalar_select %p95, %s94, 15
      %s97 = smul.addr %s96, 8
      %s98 = scalar_lea.vmem %s0, %s97
      %p99 = pneg %p33
      %p100 = pneg %p30
      %p101 = pneg %p59
      %p102 = pneg %p56
      %s103 = smul.u32 4, %s12
      %p104 = scmp.lt.s32.totalorder %s103, 15
      %s105 = scalar_select %p104, %s103, 15
      %s106 = smul.addr %s105, 8
      %s107 = scalar_lea.vmem %s1, %s106
      %s108 = smul.u32 4, %s12
      %p109 = scmp.lt.s32.totalorder %s108, 15
      %s110 = scalar_select %p109, %s108, 15
      %s111 = smul.addr %s110, 8
      %s112 = scalar_lea.vmem %s0, %s111
      %s113 = smul.u32 4, %s12
      %s114 = smul.u32 4, %s12
      %p115 = scmp.lt.s32.totalorder %s114, 15
      %s116 = scalar_select %p115, %s114, 15
      %s117 = smul.addr %s116, 8
      %s118 = scalar_lea.vmem %s1, %s117
      %s119 = smul.u32 4, %s12
      %v121 = vld [vmem:[%s112] sm:$0xff]
      %v122 = vld [vmem:[%s112 + $0x8] sm:$0xff]
      %v123 = vld [vmem:[%s112 + $0x10] sm:$0xff]
      %v124 = vld [vmem:[%s112 + $0x18] sm:$0xff]
      %129 = vrot.lane.b32.xlu0 %v121, 112
      %v130 = vpop.permute.xlu0 %129
      %131 = vrot.lane.b32.xlu0 %v122, 112
      %v132 = vpop.permute.xlu0 %131
      %133 = vrot.lane.b32.xlu0 %v123, 112
      %v134 = vpop.permute.xlu0 %133
      %135 = vrot.lane.b32.xlu0 %v124, 112
      %v136 = vpop.permute.xlu0 %135
      %v141 = vmax.f32 %v121, %v130
      %v142 = vmax.f32 %v122, %v132
      %v143 = vmax.f32 %v123, %v134
      %v144 = vmax.f32 %v124, %v136
      %v145 = vlaneseq
      %v146 = vshrl.u32 %v145, 7
      %v147 = vadd.s32 %v146, 8
      %v148 = vlaneseq
      %v149 = vand.u32 %v148, 127
      %v150 = vmul.u32 %v149, 2
      %vm151 = vcmp.eq.s32.totalorder %v146, %v150
      %vm152 = vcmp.eq.s32.totalorder %v147, %v150
      %v153 = vsel %vm151, 1, 0
      %v154 = vsel %vm152, 1, 0
      %v155 = vcvt.s32.f32 %v153
      %v156 = vcvt.s32.f32 %v154
      %v157 = vpack.c.bf16 %v156, %v155
      %v158 = vadd.s32 %v150, 1
      %vm159 = vcmp.eq.s32.totalorder %v146, %v158
      %vm160 = vcmp.eq.s32.totalorder %v147, %v158
      %v161 = vsel %vm159, 1, 0
      %v162 = vsel %vm160, 1, 0
      %v163 = vcvt.s32.f32 %v161
      %v164 = vcvt.s32.f32 %v162
      %v165 = vpack.c.bf16 %v164, %v163
      %v166 = vpack.c.bf16 %v142, %v141
      %v167 = vpack.c.bf16 %v144, %v143
      %v168 = vunpack.c.l.bf16 %v166
      %v169 = vunpack.c.h.bf16 %v166
      %v170 = vunpack.c.l.bf16 %v167
      %v171 = vunpack.c.h.bf16 %v167
      %v172 = vsub.f32 %v141, %v168
      %v173 = vsub.f32 %v142, %v169
      %v174 = vsub.f32 %v143, %v170
      %v175 = vsub.f32 %v144, %v171
      %v176 = vpack.c.bf16 %v173, %v172
      %v177 = vpack.c.bf16 %v175, %v174
      %v178 = vunpack.c.l.bf16 %v176
      %v179 = vunpack.c.h.bf16 %v176
      %v180 = vunpack.c.l.bf16 %v177
      %v181 = vunpack.c.h.bf16 %v177
      %v182 = vsub.f32 %v172, %v178
      %v183 = vsub.f32 %v173, %v179
      %v184 = vsub.f32 %v174, %v180
      %v185 = vsub.f32 %v175, %v181
      %v186 = vpack.c.bf16 %v183, %v182
      %v187 = vpack.c.bf16 %v185, %v184
      %vm188 = vcmask 130048
      %v190 = vsel %vm188, %v176, 0
      %v193 = vsel %vm188, %v177, 0
      %195 = vmatprep.subr.bf16.mxu0 0
      %196 = vmatpush1.bf16.msra.mxu0 %v157
      %197 = vmatprep.subr.bf16.mxu0 0
      %198 = vmatpush1.bf16.msra.mxu0 0
      %199 = vmatprep.subr.bf16.mxu0 0
      %200 = vmatpush1.bf16.msra.mxu0 0
      %201 = vmatprep.subr.bf16.mxu0 0
      %202 = vmatpush1.bf16.msra.mxu0 0
      %203 = vmatprep.subr.bf16.mxu0 0
      %204 = vmatpush1.bf16.msra.mxu0 0
      %205 = vmatprep.subr.bf16.mxu0 0
      %206 = vmatpush1.bf16.msra.mxu0 0
      %207 = vmatprep.subr.bf16.mxu0 0
      %208 = vmatpush1.bf16.msra.mxu0 0
      %209 = vmatprep.subr.bf16.mxu0 0
      %210 = vmatpush1.bf16.msra.mxu0 0
      %211 = vmatprep.subr.bf16.mxu0 0
      %212 = vmatpush1.bf16.msra.mxu0 0
      %213 = vmatprep.subr.bf16.mxu0 0
      %214 = vmatpush1.bf16.msra.mxu0 0
      %215 = vmatprep.subr.bf16.mxu0 0
      %216 = vmatpush1.bf16.msra.mxu0 0
      %217 = vmatprep.subr.bf16.mxu0 0
      %218 = vmatpush1.bf16.msra.mxu0 0
      %219 = vmatprep.subr.bf16.mxu0 0
      %220 = vmatpush1.bf16.msra.mxu0 0
      %221 = vmatprep.subr.bf16.mxu0 0
      %222 = vmatpush1.bf16.msra.mxu0 0
      %223 = vmatprep.subr.bf16.mxu0 0
      %224 = vmatpush1.bf16.msra.mxu0 0
      %225 = vmatprep.subr.bf16.mxu0 0
      %226 = vmatpush1.bf16.msra.mxu0 0
      %227 = vmatprep.mubr.bf16.mxu0 0
      %228 = vmatmul.mubr.bf16.gmra.mrb[0].mxu0 %v190
      %v229 = vpop.f32.mrb[0].mxu0
      %v230 = vadd.f32 0.0, %v229
      %v231 = vpop.f32.mrb[0].mxu0
      %v232 = vpop.f32.mrb[0].mxu0
      %v233 = vadd.f32 0.0, %v232
      %v234 = vpop.f32.mrb[0].mxu0
      %235 = vmatprep.mubr.bf16.mxu0 0
      %236 = vmatmul.mubr.bf16.gmra.mrb[0].mxu0 %v193
      %v237 = vpop.f32.mrb[0].mxu0
      %v238 = vadd.f32 0.0, %v237
      %v239 = vpop.f32.mrb[0].mxu0
      %v240 = vpop.f32.mrb[0].mxu0
      %v241 = vadd.f32 0.0, %v240
      %v242 = vpop.f32.mrb[0].mxu0
      %243 = vdwg.mxu0
      %v245 = vsel %vm188, %v166, 0
      %v248 = vsel %vm188, %v167, 0
      %250 = vmatprep.subr.bf16.mxu0 0
      %251 = vmatpush1.bf16.msra.mxu0 %v157
      %252 = vmatprep.subr.bf16.mxu0 0
      %253 = vmatpush1.bf16.msra.mxu0 0
      %254 = vmatprep.subr.bf16.mxu0 0
      %255 = vmatpush1.bf16.msra.mxu0 0
      %256 = vmatprep.subr.bf16.mxu0 0
      %257 = vmatpush1.bf16.msra.mxu0 0
      %258 = vmatprep.subr.bf16.mxu0 0
      %259 = vmatpush1.bf16.msra.mxu0 0
      %260 = vmatprep.subr.bf16.mxu0 0
      %261 = vmatpush1.bf16.msra.mxu0 0
      %262 = vmatprep.subr.bf16.mxu0 0
      %263 = vmatpush1.bf16.msra.mxu0 0
      %264 = vmatprep.subr.bf16.mxu0 0
      %265 = vmatpush1.bf16.msra.mxu0 0
      %266 = vmatprep.subr.bf16.mxu0 0
      %267 = vmatpush1.bf16.msra.mxu0 0
      %268 = vmatprep.subr.bf16.mxu0 0
      %269 = vmatpush1.bf16.msra.mxu0 0
      %270 = vmatprep.subr.bf16.mxu0 0
      %271 = vmatpush1.bf16.msra.mxu0 0
      %272 = vmatprep.subr.bf16.mxu0 0
      %273 = vmatpush1.bf16.msra.mxu0 0
      %274 = vmatprep.subr.bf16.mxu0 0
      %275 = vmatpush1.bf16.msra.mxu0 0
      %276 = vmatprep.subr.bf16.mxu0 0
      %277 = vmatpush1.bf16.msra.mxu0 0
      %278 = vmatprep.subr.bf16.mxu0 0
      %279 = vmatpush1.bf16.msra.mxu0 0
      %280 = vmatprep.subr.bf16.mxu0 0
      %281 = vmatpush1.bf16.msra.mxu0 0
      %282 = vmatprep.mubr.bf16.mxu0 0
      %283 = vmatmul.mubr.bf16.gmra.mrb[0].mxu0 %v245
      %v284 = vpop.f32.mrb[0].mxu0
      %v285 = vadd.f32 %v230, %v284
      %v286 = vpop.f32.mrb[0].mxu0
      %v287 = vpop.f32.mrb[0].mxu0
      %v288 = vadd.f32 %v233, %v287
      %v289 = vpop.f32.mrb[0].mxu0
      %290 = vmatprep.mubr.bf16.mxu0 0
      %291 = vmatmul.mubr.bf16.gmra.mrb[0].mxu0 %v248
      %v292 = vpop.f32.mrb[0].mxu0
      %v293 = vadd.f32 %v238, %v292
      %v294 = vpop.f32.mrb[0].mxu0
      %v295 = vpop.f32.mrb[0].mxu0
      %v296 = vadd.f32 %v241, %v295
      %v297 = vpop.f32.mrb[0].mxu0
      %298 = vdwg.mxu0
      %299 = vmatprep.subr.bf16.mxu0 0
      %300 = vmatpush1.bf16.msra.mxu0 %v165
      %301 = vmatprep.subr.bf16.mxu0 0
      %302 = vmatpush1.bf16.msra.mxu0 0
      %303 = vmatprep.subr.bf16.mxu0 0
      %304 = vmatpush1.bf16.msra.mxu0 0
      %305 = vmatprep.subr.bf16.mxu0 0
      %306 = vmatpush1.bf16.msra.mxu0 0
      %307 = vmatprep.subr.bf16.mxu0 0
      %308 = vmatpush1.bf16.msra.mxu0 0
      %309 = vmatprep.subr.bf16.mxu0 0
      %310 = vmatpush1.bf16.msra.mxu0 0
      %311 = vmatprep.subr.bf16.mxu0 0
      %312 = vmatpush1.bf16.msra.mxu0 0
      %313 = vmatprep.subr.bf16.mxu0 0
      %314 = vmatpush1.bf16.msra.mxu0 0
      %315 = vmatprep.subr.bf16.mxu0 0
      %316 = vmatpush1.bf16.msra.mxu0 0
      %317 = vmatprep.subr.bf16.mxu0 0
      %318 = vmatpush1.bf16.msra.mxu0 0
      %319 = vmatprep.subr.bf16.mxu0 0
      %320 = vmatpush1.bf16.msra.mxu0 0
      %321 = vmatprep.subr.bf16.mxu0 0
      %322 = vmatpush1.bf16.msra.mxu0 0
      %323 = vmatprep.subr.bf16.mxu0 0
      %324 = vmatpush1.bf16.msra.mxu0 0
      %325 = vmatprep.subr.bf16.mxu0 0
      %326 = vmatpush1.bf16.msra.mxu0 0
      %327 = vmatprep.subr.bf16.mxu0 0
      %328 = vmatpush1.bf16.msra.mxu0 0
      %329 = vmatprep.subr.bf16.mxu0 0
      %330 = vmatpush1.bf16.msra.mxu0 0
      %331 = vmatprep.mubr.bf16.mxu0 0
      %332 = vmatmul.mubr.bf16.gmra.mrb[0].mxu0 %v190
      %v333 = vpop.f32.mrb[0].mxu0
      %v334 = vadd.f32 0.0, %v333
      %v335 = vpop.f32.mrb[0].mxu0
      %v336 = vpop.f32.mrb[0].mxu0
      %v337 = vadd.f32 0.0, %v336
      %v338 = vpop.f32.mrb[0].mxu0
      %339 = vmatprep.mubr.bf16.mxu0 0
      %340 = vmatmul.mubr.bf16.gmra.mrb[0].mxu0 %v193
      %v341 = vpop.f32.mrb[0].mxu0
      %v342 = vadd.f32 0.0, %v341
      %v343 = vpop.f32.mrb[0].mxu0
      %v344 = vpop.f32.mrb[0].mxu0
      %v345 = vadd.f32 0.0, %v344
      %v346 = vpop.f32.mrb[0].mxu0
      %347 = vdwg.mxu0
      %348 = vmatprep.subr.bf16.mxu0 0
      %349 = vmatpush1.bf16.msra.mxu0 %v165
      %350 = vmatprep.subr.bf16.mxu0 0
      %351 = vmatpush1.bf16.msra.mxu0 0
      %352 = vmatprep.subr.bf16.mxu0 0
      %353 = vmatpush1.bf16.msra.mxu0 0
      %354 = vmatprep.subr.bf16.mxu0 0
      %355 = vmatpush1.bf16.msra.mxu0 0
      %356 = vmatprep.subr.bf16.mxu0 0
      %357 = vmatpush1.bf16.msra.mxu0 0
      %358 = vmatprep.subr.bf16.mxu0 0
      %359 = vmatpush1.bf16.msra.mxu0 0
      %360 = vmatprep.subr.bf16.mxu0 0
      %361 = vmatpush1.bf16.msra.mxu0 0
      %362 = vmatprep.subr.bf16.mxu0 0
      %363 = vmatpush1.bf16.msra.mxu0 0
      %364 = vmatprep.subr.bf16.mxu0 0
      %365 = vmatpush1.bf16.msra.mxu0 0
      %366 = vmatprep.subr.bf16.mxu0 0
      %367 = vmatpush1.bf16.msra.mxu0 0
      %368 = vmatprep.subr.bf16.mxu0 0
      %369 = vmatpush1.bf16.msra.mxu0 0
      %370 = vmatprep.subr.bf16.mxu0 0
      %371 = vmatpush1.bf16.msra.mxu0 0
      %372 = vmatprep.subr.bf16.mxu0 0
      %373 = vmatpush1.bf16.msra.mxu0 0
      %374 = vmatprep.subr.bf16.mxu0 0
      %375 = vmatpush1.bf16.msra.mxu0 0
      %376 = vmatprep.subr.bf16.mxu0 0
      %377 = vmatpush1.bf16.msra.mxu0 0
      %378 = vmatprep.subr.bf16.mxu0 0
      %379 = vmatpush1.bf16.msra.mxu0 0
      %380 = vmatprep.mubr.bf16.mxu0 0
      %381 = vmatmul.mubr.bf16.gmra.mrb[0].mxu0 %v245
      %v382 = vpop.f32.mrb[0].mxu0
      %v383 = vadd.f32 %v334, %v382
      %v384 = vpop.f32.mrb[0].mxu0
      %v385 = vpop.f32.mrb[0].mxu0
      %v386 = vadd.f32 %v337, %v385
      %v387 = vpop.f32.mrb[0].mxu0
      %388 = vmatprep.mubr.bf16.mxu0 0
      %389 = vmatmul.mubr.bf16.gmra.mrb[0].mxu0 %v248
      %v390 = vpop.f32.mrb[0].mxu0
      %v391 = vadd.f32 %v342, %v390
      %v392 = vpop.f32.mrb[0].mxu0
      %v393 = vpop.f32.mrb[0].mxu0
      %v394 = vadd.f32 %v345, %v393
      %v395 = vpop.f32.mrb[0].mxu0
      %396 = vdwg.mxu0
      %v398 = vsel %vm188, %v186, 0
      %v401 = vsel %vm188, %v187, 0
      %403 = vmatprep.subr.bf16.mxu0 0
      %404 = vmatpush1.bf16.msra.mxu0 %v157
      %405 = vmatprep.subr.bf16.mxu0 0
      %406 = vmatpush1.bf16.msra.mxu0 0
      %407 = vmatprep.subr.bf16.mxu0 0
      %408 = vmatpush1.bf16.msra.mxu0 0
      %409 = vmatprep.subr.bf16.mxu0 0
      %410 = vmatpush1.bf16.msra.mxu0 0
      %411 = vmatprep.subr.bf16.mxu0 0
      %412 = vmatpush1.bf16.msra.mxu0 0
      %413 = vmatprep.subr.bf16.mxu0 0
      %414 = vmatpush1.bf16.msra.mxu0 0
      %415 = vmatprep.subr.bf16.mxu0 0
      %416 = vmatpush1.bf16.msra.mxu0 0
      %417 = vmatprep.subr.bf16.mxu0 0
      %418 = vmatpush1.bf16.msra.mxu0 0
      %419 = vmatprep.subr.bf16.mxu0 0
      %420 = vmatpush1.bf16.msra.mxu0 0
      %421 = vmatprep.subr.bf16.mxu0 0
      %422 = vmatpush1.bf16.msra.mxu0 0
      %423 = vmatprep.subr.bf16.mxu0 0
      %424 = vmatpush1.bf16.msra.mxu0 0
      %425 = vmatprep.subr.bf16.mxu0 0
      %426 = vmatpush1.bf16.msra.mxu0 0
      %427 = vmatprep.subr.bf16.mxu0 0
      %428 = vmatpush1.bf16.msra.mxu0 0
      %429 = vmatprep.subr.bf16.mxu0 0
      %430 = vmatpush1.bf16.msra.mxu0 0
      %431 = vmatprep.subr.bf16.mxu0 0
      %432 = vmatpush1.bf16.msra.mxu0 0
      %433 = vmatprep.subr.bf16.mxu0 0
      %434 = vmatpush1.bf16.msra.mxu0 0
      %435 = vmatprep.mubr.bf16.mxu0 0
      %436 = vmatmul.mubr.bf16.gmra.mrb[0].mxu0 %v398
      %v437 = vpop.f32.mrb[0].mxu0
      %v438 = vadd.f32 0.0, %v437
      %v439 = vpop.f32.mrb[0].mxu0
      %v440 = vpop.f32.mrb[0].mxu0
      %v441 = vadd.f32 0.0, %v440
      %v442 = vpop.f32.mrb[0].mxu0
      %443 = vmatprep.mubr.bf16.mxu0 0
      %444 = vmatmul.mubr.bf16.gmra.mrb[0].mxu0 %v401
      %v445 = vpop.f32.mrb[0].mxu0
      %v446 = vadd.f32 0.0, %v445
      %v447 = vpop.f32.mrb[0].mxu0
      %v448 = vpop.f32.mrb[0].mxu0
      %v449 = vadd.f32 0.0, %v448
      %v450 = vpop.f32.mrb[0].mxu0
      %451 = vdwg.mxu0
      %v452 = vadd.f32 %v285, %v438
      %v453 = vadd.f32 %v288, %v441
      %v454 = vadd.f32 %v293, %v446
      %v455 = vadd.f32 %v296, %v449
      %456 = vmatprep.subr.bf16.mxu0 0
      %457 = vmatpush1.bf16.msra.mxu0 %v165
      %458 = vmatprep.subr.bf16.mxu0 0
      %459 = vmatpush1.bf16.msra.mxu0 0
      %460 = vmatprep.subr.bf16.mxu0 0
      %461 = vmatpush1.bf16.msra.mxu0 0
      %462 = vmatprep.subr.bf16.mxu0 0
      %463 = vmatpush1.bf16.msra.mxu0 0
      %464 = vmatprep.subr.bf16.mxu0 0
      %465 = vmatpush1.bf16.msra.mxu0 0
      %466 = vmatprep.subr.bf16.mxu0 0
      %467 = vmatpush1.bf16.msra.mxu0 0
      %468 = vmatprep.subr.bf16.mxu0 0
      %469 = vmatpush1.bf16.msra.mxu0 0
      %470 = vmatprep.subr.bf16.mxu0 0
      %471 = vmatpush1.bf16.msra.mxu0 0
      %472 = vmatprep.subr.bf16.mxu0 0
      %473 = vmatpush1.bf16.msra.mxu0 0
      %474 = vmatprep.subr.bf16.mxu0 0
      %475 = vmatpush1.bf16.msra.mxu0 0
      %476 = vmatprep.subr.bf16.mxu0 0
      %477 = vmatpush1.bf16.msra.mxu0 0
      %478 = vmatprep.subr.bf16.mxu0 0
      %479 = vmatpush1.bf16.msra.mxu0 0
      %480 = vmatprep.subr.bf16.mxu0 0
      %481 = vmatpush1.bf16.msra.mxu0 0
      %482 = vmatprep.subr.bf16.mxu0 0
      %483 = vmatpush1.bf16.msra.mxu0 0
      %484 = vmatprep.subr.bf16.mxu0 0
      %485 = vmatpush1.bf16.msra.mxu0 0
      %486 = vmatprep.subr.bf16.mxu0 0
      %487 = vmatpush1.bf16.msra.mxu0 0
      %488 = vmatprep.mubr.bf16.mxu0 0
      %489 = vmatmul.mubr.bf16.gmra.mrb[0].mxu0 %v398
      %v490 = vpop.f32.mrb[0].mxu0
      %v491 = vadd.f32 0.0, %v490
      %v492 = vpop.f32.mrb[0].mxu0
      %v493 = vpop.f32.mrb[0].mxu0
      %v494 = vadd.f32 0.0, %v493
      %v495 = vpop.f32.mrb[0].mxu0
      %496 = vmatprep.mubr.bf16.mxu0 0
      %497 = vmatmul.mubr.bf16.gmra.mrb[0].mxu0 %v401
      %v498 = vpop.f32.mrb[0].mxu0
      %v499 = vadd.f32 0.0, %v498
      %v500 = vpop.f32.mrb[0].mxu0
      %v501 = vpop.f32.mrb[0].mxu0
      %v502 = vadd.f32 0.0, %v501
      %v503 = vpop.f32.mrb[0].mxu0
      %504 = vdwg.mxu0
      %v505 = vadd.f32 %v383, %v491
      %v506 = vadd.f32 %v386, %v494
      %v507 = vadd.f32 %v391, %v499
      %v508 = vadd.f32 %v394, %v502
      %v509 = vmax.f32 %v452, %v505
      %v510 = vmax.f32 %v453, %v506
      %v511 = vmax.f32 %v454, %v507
      %v512 = vmax.f32 %v455, %v508
      %vm513 = vcmask 64512
      %514 = vst.msk [vmem:[%s118] sm:$0xff] %vm513, %v509
      %515 = vst.msk [vmem:[%s118 + $0x8] sm:$0xff] %vm513, %v510
      %516 = vst.msk [vmem:[%s118 + $0x10] sm:$0xff] %vm513, %v511
      %517 = vst.msk [vmem:[%s118 + $0x18] sm:$0xff] %vm513, %v512
      %s518 = smul.u32 4, %s12
      %p519 = scmp.lt.s32.totalorder %s518, 15
      %s520 = scalar_select %p519, %s518, 15
      %s521 = smul.addr %s520, 8
      %s522 = scalar_lea.vmem %s1, %s521
      // Predicated region
      $region25: #{tpu_custom_call.1} parent=23 // pred_check
        %p523 = pneg %p56
      $region26: #{tpu_custom_call.1} parent=23 // pred_check_branch
        %525 = sbr.rel (%p523) target = $region28
      $region27: #{tpu_custom_call.1} parent=23 // pred_region
        %s526 = smul.u32 4, %s12
      $region28: #{tpu_custom_call.1} parent=23 // pred_fallthru
        _
    $region24: #{tpu_custom_call.1} parent=5 // pred_fallthru
      _
    %p527 = scmp.le.s32.totalorder 2, %s7
    // Predicated region
    $region29: #{tpu_custom_call.1} parent=5 // pred_check
      %p528 = pneg %p527
    $region30: #{tpu_custom_call.1} parent=5 // pred_check_branch
      %530 = sbr.rel (%p528) target = $region32
    $region31: #{tpu_custom_call.1} parent=5 // pred_region
      %s531 = ssub.s32 %s7, 2
      // Predicated region
      $region33: #{tpu_custom_call.1} parent=31 // pred_check
        %p532 = pneg %p62
      $region34: #{tpu_custom_call.1} parent=31 // pred_check_branch
        %534 = sbr.rel (%p532) target = $region36
      $region35: #{tpu_custom_call.1} parent=31 // pred_region
        %s535 = smul.u32 4, %s13
        %p536 = scmp.lt.s32.totalorder %s535, 15
        %s537 = scalar_select %p536, %s535, 15
        %s538 = smul.addr %s537, 8
        %s539 = scalar_lea.vmem %s1, %s538
      $region36: #{tpu_custom_call.1} parent=31 // pred_fallthru
        _
    $region32: #{tpu_custom_call.1} parent=5 // pred_fallthru
      _
  $region6: #{tpu_custom_call.1} parent=0 // loop_footer
    %s11 = sadd.s32 1, %s7
  $region7: #{tpu_custom_call.1} parent=0 // loop_footer_branch
    %6 = sbr.rel target = $region3
  $region8: #{tpu_custom_call.1} parent=0 // loop_exit
    _

</llo_original>
